<compile_context>
chip_gen: v7x
topology: tpu7x:2x2x1
jax: 0.10.0
libtpu: 0.0.40
codegen_flags: <defaults>
</compile_context>

<pallas_src>
import functools

import jax
import jax.numpy as jnp
from jax.experimental import pallas as pl
from jax.experimental.pallas import tpu as pltpu


# ----------------------------- kernels --------------------------------------


def _partial_ffn(x_ref, w1_ref, b1_ref, w2_ref):
    """(tm, C) x-tile -> (tm, C) partial of relu(x@W1 + b1) @ W2 (f32)."""
    x = x_ref[...].astype(w1_ref.dtype)            # in-kernel bf16 cast (free)
    h = jnp.dot(x, w1_ref[...], preferred_element_type=jnp.float32)
    h = jnp.maximum(h + b1_ref[...], 0.0)          # bias + ReLU in f32 (VPU)
    return jnp.dot(h.astype(w2_ref.dtype), w2_ref[...],
                   preferred_element_type=jnp.float32)


def _ffn_kernel_resident(x_ref, w1_ref, b1_ref, w2_ref, b2_ref, o_ref):
    # Weights fully resident in VMEM; single grid axis over row tiles.
    y = _partial_ffn(x_ref, w1_ref, b1_ref, w2_ref)
    o_ref[...] = (y + b2_ref[...]).astype(o_ref.dtype)


def _ffn_kernel_tiled_f32out(x_ref, w1_ref, b1_ref, w2_ref, b2_ref, o_ref):
    # Hidden axis tiled; output block is resident across h (index_map ignores h)
    # so we accumulate partial products directly into o_ref (f32) — no scratch.
    h_idx = pl.program_id(1)
    part = _partial_ffn(x_ref, w1_ref, b1_ref, w2_ref)

    @pl.when(h_idx == 0)
    def _():
        o_ref[...] = (part + b2_ref[...]).astype(o_ref.dtype)

    @pl.when(h_idx != 0)
    def _():
        o_ref[...] += part


def _ffn_kernel_tiled_acc(x_ref, w1_ref, b1_ref, w2_ref, b2_ref, o_ref, acc_ref):
    # Hidden axis tiled; non-f32 output dtype -> accumulate in a f32 scratch.
    h_idx = pl.program_id(1)

    @pl.when(h_idx == 0)
    def _():
        acc_ref[...] = jnp.zeros_like(acc_ref)

    acc_ref[...] += _partial_ffn(x_ref, w1_ref, b1_ref, w2_ref)

    @pl.when(h_idx == pl.num_programs(1) - 1)
    def _():
        o_ref[...] = (acc_ref[...] + b2_ref[...]).astype(o_ref.dtype)


# ----------------------------- helpers --------------------------------------


def _round_up(x, m):
    return ((x + m - 1) // m) * m


def _pick_divisor(n, candidates):
    for c in candidates:
        if n % c == 0:
            return c
    return n


def _device_policy():
    """Generation-aware tile caps and VMEM budget."""
    try:
        kind = jax.devices()[0].device_kind.lower()
    except Exception:  # pragma: no cover - defensive
        kind = ""
    if "v5 lite" in kind or "v5lite" in kind or "v5e" in kind:
        # v5e: 128x128 MXU, machine balance ~240 FLOP/B -> smaller tiles suffice.
        return dict(tm_cap=256, th_cap=256, vmem_budget=100 << 20, two_cores=False)
    if "v7" in kind:
        # v7x: 64 MiB VMEM per TensorCore, 2 TCs/chip.
        return dict(tm_cap=768, th_cap=256, vmem_budget=56 << 20, two_cores=True)
    if "v5p" in kind or "v4" in kind:
        return dict(tm_cap=512, th_cap=512, vmem_budget=100 << 20, two_cores=True)
    # v6e default: ~680 FLOP/B machine balance, 128 MiB VMEM -> big row tiles.
    return dict(tm_cap=1024, th_cap=512, vmem_budget=100 << 20, two_cores=False)


def _choose_tm(M, tm_cap, two_cores):
    tm = min(tm_cap, _round_up(M, 8))
    # Adaptive padding: step tm down while dead (padded) rows would exceed ~12.5%.
    while tm > 64:
        Mp = _round_up(M, tm)
        if (Mp - M) * 8 <= Mp:
            break
        tm = _round_up(tm // 2, 8)
    # Megacore chips: make sure the "parallel" row axis has >= 2 tiles.
    if two_cores and M > 8:
        while tm > 8 and _round_up(M, tm) // tm < 2:
            tm = _round_up(tm // 2, 8)
    return max(8, tm)


def prepare_params(w1, b1, w2, b2):
    """One-time param conversion (call once, outside the hot path).

    Weights are stored as bf16 so the kernel streams them straight from HBM
    with no per-call convert pass; biases stay f32.
    """
    return (jnp.asarray(w1, jnp.bfloat16), jnp.asarray(b1, jnp.float32),
            jnp.asarray(w2, jnp.bfloat16), jnp.asarray(b2, jnp.float32))


# ----------------------------- wrapper --------------------------------------


@functools.partial(jax.jit, static_argnames=("block_rows", "block_hidden"))
def feed_forward(x, w1, b1, w2, b2, *, block_rows=None, block_hidden=None):
    """x: (B, T, C). w1: (C, 4C), b1: (4C,), w2: (4C, C), b2: (C,) -> (B, T, C)."""
    B, T, C = x.shape
    H = w1.shape[1]                      # 4 * n_embd
    M = B * T
    policy = _device_policy()

    # bf16 weights (no-op if prepare_params already converted them once).
    w1c = w1.astype(jnp.bfloat16)
    w2c = w2.astype(jnp.bfloat16)
    b1_2d = b1.reshape(1, H).astype(jnp.float32)
    b2_2d = b2.reshape(1, C).astype(jnp.float32)

    # Row tile (multiple of 8, adaptive padding, >=2 tiles on megacore chips).
    if block_rows is not None:
        tm = block_rows
        assert tm % 8 == 0, "block_rows must be a multiple of 8"
    else:
        tm = _choose_tm(M, policy["tm_cap"], policy["two_cores"])
    Mp = _round_up(M, tm)
    n_row_tiles = Mp // tm

    x2d = x.reshape(M, C)
    if Mp != M:
        x2d = jnp.pad(x2d, ((0, Mp - M), (0, 0)))   # padded rows discarded later

    xb = jnp.dtype(x.dtype).itemsize
    ob = xb
    wb = 2  # bf16 weights

    # --- path selection: weights-resident vs hidden-tiled ---
    use_resident = False
    resident_need = 0
    if block_hidden is None:
        resident_need = (2 * tm * C * xb                 # x tile (double-buffered)
                         + 2 * C * H * wb + 2 * H * C * wb   # W1 + W2 buffers
                         + 2 * tm * C * ob               # output tile
                         + tm * H * 4 + tm * H * 2       # (tm, H) f32 + bf16 temps
                         + tm * C * 4                    # partial product temp
                         + 8 * (H + C))                  # biases
        use_resident = resident_need <= policy["vmem_budget"]

    if use_resident:
        grid = (n_row_tiles,)
        in_specs = [
            pl.BlockSpec((tm, C), lambda i: (i, 0)),      # x row tile
            pl.BlockSpec((C, H), lambda i: (0, 0)),       # W1 resident
            pl.BlockSpec((1, H), lambda i: (0, 0)),       # b1 resident
            pl.BlockSpec((H, C), lambda i: (0, 0)),       # W2 resident
            pl.BlockSpec((1, C), lambda i: (0, 0)),       # b2 resident
        ]
        out_specs = pl.BlockSpec((tm, C), lambda i: (i, 0))
        kernel = _ffn_kernel_resident
        scratch = []
        dim_sem = ("parallel",)
        weight_passes = 1
        vmem_need = resident_need
    else:
        if block_hidden is not None:
            tH = block_hidden
        else:
            cands = tuple(c for c in (512, 256, 128) if c <= policy["th_cap"])
            tH = _pick_divisor(H, cands)
        assert H % tH == 0, "hidden tile must divide 4*n_embd"
        grid = (n_row_tiles, H // tH)
        in_specs = [
            pl.BlockSpec((tm, C), lambda i, h: (i, 0)),   # x row tile
            pl.BlockSpec((C, tH), lambda i, h: (0, h)),   # W1 column block
            pl.BlockSpec((1, tH), lambda i, h: (0, h)),   # b1 chunk
            pl.BlockSpec((tH, C), lambda i, h: (h, 0)),   # W2 row block
            pl.BlockSpec((1, C), lambda i, h: (0, 0)),    # b2 (resident)
        ]
        out_specs = pl.BlockSpec((tm, C), lambda i, h: (i, 0))
        if jnp.dtype(x.dtype) == jnp.float32:
            kernel = _ffn_kernel_tiled_f32out            # accumulate into o_ref
            scratch = []
            acc_bytes = 0
        else:
            kernel = _ffn_kernel_tiled_acc                # f32 scratch accumulator
            scratch = [pltpu.VMEM((tm, C), jnp.float32)]
            acc_bytes = tm * C * 4
        dim_sem = ("parallel", "arbitrary")
        weight_passes = n_row_tiles
        vmem_need = (2 * tm * C * xb + 2 * C * tH * wb + 2 * tH * C * wb
                     + 2 * tm * C * ob + tm * tH * 4 + tm * tH * 2
                     + tm * C * 4 + acc_bytes + 8 * (H + C))

    # Explicit VMEM limit (keeps double-buffering intact across generations).
    vmem_limit = int(min(policy["vmem_budget"],
                         max(32 << 20, int(vmem_need * 1.5))))

    cost = pl.CostEstimate(
        flops=2 * 2 * Mp * C * H,                                   # two matmuls
        transcendentals=0,
        bytes_accessed=(Mp * C * (xb + ob)                          # x in + out
                        + weight_passes * (2 * C * H * wb)          # W1+W2 streams
                        + 4 * (H + C)),                             # biases
    )

    out = pl.pallas_call(
        kernel,
        out_shape=jax.ShapeDtypeStruct((Mp, C), x.dtype),
        grid_spec=pltpu.PrefetchScalarGridSpec(
            num_scalar_prefetch=0,
            grid=grid,
            in_specs=in_specs,
            out_specs=out_specs,
            scratch_shapes=scratch,
        ),
        compiler_params=pltpu.CompilerParams(
            dimension_semantics=dim_sem,
            vmem_limit_bytes=vmem_limit,
        ),
        cost_estimate=cost,
    )(x2d, w1c, b1_2d, w2c, b2_2d)

    return out[:M].reshape(B, T, C)


# ----------------------------- init & reference ------------------------------


def init_params(key, n_embd):
    """Deterministic init matching nn.Linear shapes (stored transposed: (in, out))."""
    hidden = 4 * n_embd
    k1, k2, k3, k4 = jax.random.split(key, 4)
    lim1 = 1.0 / (n_embd ** 0.5)
    lim2 = 1.0 / (hidden ** 0.5)
    w1 = jax.random.uniform(k1, (n_embd, hidden), jnp.float32, -lim1, lim1)
    b1 = jax.random.uniform(k2, (hidden,), jnp.float32, -lim1, lim1)
    w2 = jax.random.uniform(k3, (hidden, n_embd), jnp.float32, -lim2, lim2)
    b2 = jax.random.uniform(k4, (n_embd,), jnp.float32, -lim2, lim2)
    return w1, b1, w2, b2


def _reference(x, w1, b1, w2, b2):
    """Matched-precision reference (bf16 matmuls, f32 accumulation) in plain JAX."""
    B, T, C = x.shape
    xb = x.reshape(-1, C).astype(jnp.bfloat16)
    h = jnp.maximum(
        jnp.dot(xb, w1.astype(jnp.bfloat16), preferred_element_type=jnp.float32)
        + b1.astype(jnp.float32), 0.0)
    y = jnp.dot(h.astype(jnp.bfloat16), w2.astype(jnp.bfloat16),
                preferred_element_type=jnp.float32) + b2.astype(jnp.float32)
    return y.reshape(B, T, C).astype(x.dtype)


# ----------------------------- demo ------------------------------------------


if __name__ == "__main__":
    key = jax.random.PRNGKey(0)
    kx, kp, kx2, kp2 = jax.random.split(key, 4)

    dropout = 0.1   # nn.Dropout: identity at inference (eval mode)

    # --- Test 1: default (weights-resident) path, small GPT-style shapes ---
    B, T, n_embd = 2, 8, 32                       # hidden = 128
    x = jax.random.normal(kx, (B, T, n_embd), jnp.float32)
    w1, b1, w2, b2 = init_params(kp, n_embd)
    params = prepare_params(w1, b1, w2, b2)       # one-time bf16 weight cast

    y = jax.block_until_ready(feed_forward(x, *params))
    ref = _reference(x, w1, b1, w2, b2)
    assert y.shape == x.shape
    assert jnp.allclose(y, ref, atol=2e-2, rtol=2e-2), "mismatch (resident path)"

    # --- Test 2: forced hidden-tiled path + non-aligned rows (M=26, padded) ---
    B2, T2, n_embd2 = 2, 13, 64                   # hidden = 256, tiled as 2 x 128
    x2 = jax.random.normal(kx2, (B2, T2, n_embd2), jnp.float32)
    raw2 = init_params(kp2, n_embd2)
    p2 = prepare_params(*raw2)
    y2 = jax.block_until_ready(feed_forward(x2, *p2, block_hidden=128))
    ref2 = _reference(x2, *raw2)
    assert y2.shape == x2.shape
    assert jnp.allclose(y2, ref2, atol=2e-2, rtol=2e-2), "mismatch (tiled path)"

    print("KERNEL_OK")
</pallas_src>

<mosaic_0001>
module attributes {stable_mosaic.version = 11 : i64} {
  func.func @_ffn_kernel_resident(%arg0: i32, %arg1: memref<16x32xf32, #tpu.memory_space<vmem>>, %arg2: memref<32x128xbf16, #tpu.memory_space<vmem>>, %arg3: memref<1x128xf32, #tpu.memory_space<vmem>>, %arg4: memref<128x32xbf16, #tpu.memory_space<vmem>>, %arg5: memref<1x32xf32, #tpu.memory_space<vmem>>, %arg6: memref<16x32xf32, #tpu.memory_space<vmem>>) attributes {dimension_semantics = [#tpu.dimension_semantics<parallel>], iteration_bounds = array<i64: 1>, scalar_prefetch = 0 : i64, scratch_operands = 0 : i64, tpu.core_type = #tpu.core_type<tc>, window_params = [{transform_indices = @transform_0, window_bounds = array<i64: 16, 32>}, {pipeline_mode = #tpu.pipeline_mode<synchronous>, transform_indices = @transform_1, window_bounds = array<i64: 32, 128>}, {pipeline_mode = #tpu.pipeline_mode<synchronous>, transform_indices = @transform_2, window_bounds = array<i64: 1, 128>}, {pipeline_mode = #tpu.pipeline_mode<synchronous>, transform_indices = @transform_3, window_bounds = array<i64: 128, 32>}, {pipeline_mode = #tpu.pipeline_mode<synchronous>, transform_indices = @transform_4, window_bounds = array<i64: 1, 32>}, {transform_indices = @transform_5, window_bounds = array<i64: 16, 32>}]} {
    %c0 = arith.constant 0 : index
    %c0_0 = arith.constant 0 : index
    %0 = vector.load %arg1[%c0, %c0_0] : memref<16x32xf32, #tpu.memory_space<vmem>>, vector<16x32xf32>
    %1 = arith.truncf %0 : vector<16x32xf32> to vector<16x32xbf16>
    %c0_1 = arith.constant 0 : index
    %c0_2 = arith.constant 0 : index
    %2 = vector.load %arg2[%c0_1, %c0_2] : memref<32x128xbf16, #tpu.memory_space<vmem>>, vector<32x128xbf16>
    %cst = arith.constant dense<0.000000e+00> : vector<16x128xf32>
    %3 = tpu.matmul %1, %2, %cst {dimension_numbers = #tpu.dot_dimension_numbers<[1], [0], [0], [1], [0, 0, 1, 1], [], []>} : vector<16x32xbf16>, vector<32x128xbf16>, vector<16x128xf32> -> vector<16x128xf32>
    %c0_3 = arith.constant 0 : index
    %c0_4 = arith.constant 0 : index
    %4 = vector.load %arg3[%c0_3, %c0_4] : memref<1x128xf32, #tpu.memory_space<vmem>>, vector<1x128xf32>
    %5 = vector.broadcast %4 : vector<1x128xf32> to vector<16x128xf32>
    %6 = arith.addf %3, %5 : vector<16x128xf32>
    %cst_5 = arith.constant 0.000000e+00 : f32
    %7 = vector.broadcast %cst_5 : f32 to vector<16x128xf32>
    %8 = arith.maximumf %6, %7 : vector<16x128xf32>
    %9 = arith.truncf %8 : vector<16x128xf32> to vector<16x128xbf16>
    %c0_6 = arith.constant 0 : index
    %c0_7 = arith.constant 0 : index
    %10 = vector.load %arg4[%c0_6, %c0_7] : memref<128x32xbf16, #tpu.memory_space<vmem>>, vector<128x32xbf16>
    %cst_8 = arith.constant dense<0.000000e+00> : vector<16x32xf32>
    %11 = tpu.matmul %9, %10, %cst_8 {dimension_numbers = #tpu.dot_dimension_numbers<[1], [0], [0], [1], [0, 0, 1, 1], [], []>} : vector<16x128xbf16>, vector<128x32xbf16>, vector<16x32xf32> -> vector<16x32xf32>
    %c0_9 = arith.constant 0 : index
    %c0_10 = arith.constant 0 : index
    %12 = vector.load %arg5[%c0_9, %c0_10] : memref<1x32xf32, #tpu.memory_space<vmem>>, vector<1x32xf32>
    %13 = vector.broadcast %12 : vector<1x32xf32> to vector<16x32xf32>
    %14 = arith.addf %11, %13 : vector<16x32xf32>
    %c0_11 = arith.constant 0 : index
    %c0_12 = arith.constant 0 : index
    %15 = vector.load %arg6[%c0_11, %c0_12] : memref<16x32xf32, #tpu.memory_space<vmem>>, vector<16x32xf32>
    tpu.vector_store %arg6[%c0_11, %c0_12], %14 {strides = array<i32>} : memref<16x32xf32, #tpu.memory_space<vmem>>, vector<16x32xf32>,
    return
  }
  func.func @transform_0(%arg0: i32) -> (i32, i32) {
    %c0_i32 = arith.constant 0 : i32
    %c0_i32_0 = arith.constant 0 : i32
    return %arg0, %c0_i32 : i32, i32
  }
  func.func @transform_1(%arg0: i32) -> (i32, i32) {
    %c0_i32 = arith.constant 0 : i32
    %c0_i32_0 = arith.constant 0 : i32
    %c0_i32_1 = arith.constant 0 : i32
    return %c0_i32, %c0_i32_0 : i32, i32
  }
  func.func @transform_2(%arg0: i32) -> (i32, i32) {
    %c0_i32 = arith.constant 0 : i32
    %c0_i32_0 = arith.constant 0 : i32
    %c0_i32_1 = arith.constant 0 : i32
    return %c0_i32, %c0_i32_0 : i32, i32
  }
  func.func @transform_3(%arg0: i32) -> (i32, i32) {
    %c0_i32 = arith.constant 0 : i32
    %c0_i32_0 = arith.constant 0 : i32
    %c0_i32_1 = arith.constant 0 : i32
    return %c0_i32, %c0_i32_0 : i32, i32
  }
  func.func @transform_4(%arg0: i32) -> (i32, i32) {
    %c0_i32 = arith.constant 0 : i32
    %c0_i32_0 = arith.constant 0 : i32
    %c0_i32_1 = arith.constant 0 : i32
    return %c0_i32, %c0_i32_0 : i32, i32
  }
  func.func @transform_5(%arg0: i32) -> (i32, i32) {
    %c0_i32 = arith.constant 0 : i32
    %c0_i32_0 = arith.constant 0 : i32
    return %arg0, %c0_i32 : i32, i32
  }
}

</mosaic_0001>

<llo_original>
// kernel: feed_forward.1
$region0: #{feed_forward.1}
  #allocation0 [shape = 'u32[]', space=smem, size = 0x4, offset = 0x4, fixed_abs, tag = 'smem constant byte address 0x4 - core index']
  #allocation1 [shape = 'u32[144,128]{1,0:T(1,128)}', space=vmem, size = 0x12000, scoped, tag = 'internal scratch']
  %s0 = inlined_call_operand.vmem [shape: f32[16,32], index: 0, kind: input, shape index: {}]
  %s1 = inlined_call_operand.vmem [shape: bf16[32,128], index: 1, kind: input, shape index: {}]
  %s2 = inlined_call_operand.vmem [shape: f32[1,128], index: 2, kind: input, shape index: {}]
  %s3 = inlined_call_operand.vmem [shape: bf16[128,32], index: 3, kind: input, shape index: {}]
  %s4 = inlined_call_operand.vmem [shape: f32[1,32], index: 4, kind: input, shape index: {}]
  %s5 = inlined_call_operand.hbm [shape: f32[16,32], index: 5, kind: output, shape index: {}]
  %s6 = sld [smem:[#allocation0]]
  $region30: #{feed_forward.1} parent=0
    _
  %s8 = ssub.s32 1, %s6
  %s9 = scalar_select 0, %s8, %s6
  $region1: #{feed_forward.1} parent=0
    #allocation2 [shape = 'u8[8192]{0}', space=vmem, size = 0x2000, scoped, tag = 'output window, operand 0, single buffered']
    #allocation3 [shape = 's32[1]{0}', space=sflag, size = 0x4, scoped, tag = 'scoped memory for feed_forward.1']
    %10 = vsyncpa [#allocation3], 0
    // Predicated region
    $region2: #{feed_forward.1} parent=1 // pred_check
      _
    $region3: #{feed_forward.1} parent=1 // pred_check_branch
      %12 = sbr.rel (0) target = $region5
    $region4: #{feed_forward.1} parent=1 // pred_region
      _
    $region5: #{feed_forward.1} parent=1 // pred_fallthru
      _
    // Predicated region
    $region6: #{feed_forward.1} parent=1 // pred_check
      _
    $region7: #{feed_forward.1} parent=1 // pred_check_branch
      %14 = sbr.rel (0) target = $region9
    $region8: #{feed_forward.1} parent=1 // pred_region
      _
    $region9: #{feed_forward.1} parent=1 // pred_fallthru
      _
    // Predicated region
    $region10: #{feed_forward.1} parent=1 // pred_check
      _
    $region11: #{feed_forward.1} parent=1 // pred_check_branch
      %16 = sbr.rel (0) target = $region13
    $region12: #{feed_forward.1} parent=1 // pred_region
      _
    $region13: #{feed_forward.1} parent=1 // pred_fallthru
      _
    // Predicated region
    $region14: #{feed_forward.1} parent=1 // pred_check
      _
    $region15: #{feed_forward.1} parent=1 // pred_check_branch
      %18 = sbr.rel (0) target = $region17
    $region16: #{feed_forward.1} parent=1 // pred_region
      _
    $region17: #{feed_forward.1} parent=1 // pred_fallthru
      _
    // Predicated region
    $region18: #{feed_forward.1} parent=1 // pred_check
      _
    $region19: #{feed_forward.1} parent=1 // pred_check_branch
      %20 = sbr.rel (0) target = $region21
    $region20: #{feed_forward.1} parent=1 // pred_region
      _
    $region21: #{feed_forward.1} parent=1 // pred_fallthru
      _
    %v22 = vld [vmem:[%s0] sm:$0xff]
    %v23 = vld [vmem:[%s0 + $0x8] sm:$0xff]
    %v24 = vpack.c.bf16 %v23, %v22
    %v25 = vld [vmem:[%s1] sm:$0xf]
    %v26 = vld [vmem:[%s1 + $0x4] sm:$0xf]
    %v27 = vld [vmem:[%s1 + $0x8] sm:$0xf]
    %v28 = vld [vmem:[%s1 + $0xc] sm:$0xf]
    %v29 = vld [vmem:[%s2] sm:$0x1]
    %v31 = vlaneseq
    %v32 = vshrl.u32 %v31, 7
    %v33 = vsub.s32 0, %v32
    %v34 = vrot.slane %v29, %v33
    %v40 = vunpack.c.l.b16 %v25
    %v41 = vunpack.c.l.b16 %v26
    %v42 = vunpack.c.l.b16 %v27
    %v43 = vunpack.c.l.b16 %v28
    %v44 = vpack.c.b16 %v41, %v40
    %v45 = vpack.c.b16 %v43, %v42
    %vm48 = vcmask 261120
    %v50 = vsel %vm48, %v24, 0
    %52 = vmatprep.subr.bf16.mxu0 0
    %53 = vmatpush1.bf16.msra.mxu0 %v44
    %54 = vmatprep.subr.bf16.mxu0 0
    %55 = vmatpush1.bf16.msra.mxu0 %v45
    %56 = vmatprep.subr.bf16.mxu0 0
    %57 = vmatpush1.bf16.msra.mxu0 0
    %58 = vmatprep.subr.bf16.mxu0 0
    %59 = vmatpush1.bf16.msra.mxu0 0
    %60 = vmatprep.subr.bf16.mxu0 0
    %61 = vmatpush1.bf16.msra.mxu0 0
    %62 = vmatprep.subr.bf16.mxu0 0
    %63 = vmatpush1.bf16.msra.mxu0 0
    %64 = vmatprep.subr.bf16.mxu0 0
    %65 = vmatpush1.bf16.msra.mxu0 0
    %66 = vmatprep.subr.bf16.mxu0 0
    %67 = vmatpush1.bf16.msra.mxu0 0
    %68 = vmatprep.subr.bf16.mxu0 0
    %69 = vmatpush1.bf16.msra.mxu0 0
    %70 = vmatprep.subr.bf16.mxu0 0
    %71 = vmatpush1.bf16.msra.mxu0 0
    %72 = vmatprep.subr.bf16.mxu0 0
    %73 = vmatpush1.bf16.msra.mxu0 0
    %74 = vmatprep.subr.bf16.mxu0 0
    %75 = vmatpush1.bf16.msra.mxu0 0
    %76 = vmatprep.subr.bf16.mxu0 0
    %77 = vmatpush1.bf16.msra.mxu0 0
    %78 = vmatprep.subr.bf16.mxu0 0
    %79 = vmatpush1.bf16.msra.mxu0 0
    %80 = vmatprep.subr.bf16.mxu0 0
    %81 = vmatpush1.bf16.msra.mxu0 0
    %82 = vmatprep.subr.bf16.mxu0 0
    %83 = vmatpush1.bf16.msra.mxu0 0
    %84 = vmatprep.mubr.bf16.mxu0 0
    %85 = vmatmul.mubr.bf16.gmra.mrb[0].mxu0 %v50
    %v86 = vpop.f32.mrb[0].mxu0
    %v87 = vadd.f32 %v34, %v86
    %v88 = vpop.f32.mrb[0].mxu0
    %v89 = vpop.f32.mrb[0].mxu0
    %v90 = vadd.f32 %v34, %v89
    %v91 = vpop.f32.mrb[0].mxu0
    %92 = vdwg.mxu0
    %v93 = vmax.f32 %v87, 0.0
    %v94 = vmax.f32 %v90, 0.0
    %v95 = vpack.c.bf16 %v94, %v93
    %v96 = vld [vmem:[%s3] sm:$0xf]
    %v97 = vld [vmem:[%s3 + $0x4] sm:$0xf]
    %v98 = vld [vmem:[%s3 + $0x8] sm:$0xf]
    %v99 = vld [vmem:[%s3 + $0xc] sm:$0xf]
    %v100 = vld [vmem:[%s3 + $0x10] sm:$0xf]
    %v101 = vld [vmem:[%s3 + $0x14] sm:$0xf]
    %v102 = vld [vmem:[%s3 + $0x18] sm:$0xf]
    %v103 = vld [vmem:[%s3 + $0x1c] sm:$0xf]
    %v104 = vld [vmem:[%s3 + $0x20] sm:$0xf]
    %v105 = vld [vmem:[%s3 + $0x24] sm:$0xf]
    %v106 = vld [vmem:[%s3 + $0x28] sm:$0xf]
    %v107 = vld [vmem:[%s3 + $0x2c] sm:$0xf]
    %v108 = vld [vmem:[%s3 + $0x30] sm:$0xf]
    %v109 = vld [vmem:[%s3 + $0x34] sm:$0xf]
    %v110 = vld [vmem:[%s3 + $0x38] sm:$0xf]
    %v111 = vld [vmem:[%s3 + $0x3c] sm:$0xf]
    %v112 = vld [vmem:[%s4] sm:$0x1]
    %v114 = vlaneseq
    %v115 = vshrl.u32 %v114, 7
    %v116 = vsub.s32 0, %v115
    %v117 = vrot.slane %v112, %v116
    %v135 = vunpack.c.l.b16 %v96
    %v136 = vunpack.c.l.b16 %v97
    %v137 = vunpack.c.l.b16 %v98
    %v138 = vunpack.c.l.b16 %v99
    %v139 = vunpack.c.l.b16 %v100
    %v140 = vunpack.c.l.b16 %v101
    %v141 = vunpack.c.l.b16 %v102
    %v142 = vunpack.c.l.b16 %v103
    %v143 = vunpack.c.l.b16 %v104
    %v144 = vunpack.c.l.b16 %v105
    %v145 = vunpack.c.l.b16 %v106
    %v146 = vunpack.c.l.b16 %v107
    %v147 = vunpack.c.l.b16 %v108
    %v148 = vunpack.c.l.b16 %v109
    %v149 = vunpack.c.l.b16 %v110
    %v150 = vunpack.c.l.b16 %v111
    %v151 = vpack.c.b16 %v136, %v135
    %v152 = vpack.c.b16 %v138, %v137
    %v153 = vpack.c.b16 %v140, %v139
    %v154 = vpack.c.b16 %v142, %v141
    %v155 = vpack.c.b16 %v144, %v143
    %v156 = vpack.c.b16 %v146, %v145
    %v157 = vpack.c.b16 %v148, %v147
    %v158 = vpack.c.b16 %v150, %v149
    %167 = vmatprep.subr.bf16.mxu0 0
    %168 = vmatpush1.bf16.msra.mxu0 %v151
    %169 = vmatprep.subr.bf16.mxu0 0
    %170 = vmatpush1.bf16.msra.mxu0 %v152
    %171 = vmatprep.subr.bf16.mxu0 0
    %172 = vmatpush1.bf16.msra.mxu0 %v153
    %173 = vmatprep.subr.bf16.mxu0 0
    %174 = vmatpush1.bf16.msra.mxu0 %v154
    %175 = vmatprep.subr.bf16.mxu0 0
    %176 = vmatpush1.bf16.msra.mxu0 %v155
    %177 = vmatprep.subr.bf16.mxu0 0
    %178 = vmatpush1.bf16.msra.mxu0 %v156
    %179 = vmatprep.subr.bf16.mxu0 0
    %180 = vmatpush1.bf16.msra.mxu0 %v157
    %181 = vmatprep.subr.bf16.mxu0 0
    %182 = vmatpush1.bf16.msra.mxu0 %v158
    %183 = vmatprep.subr.bf16.mxu0 0
    %184 = vmatpush1.bf16.msra.mxu0 0
    %185 = vmatprep.subr.bf16.mxu0 0
    %186 = vmatpush1.bf16.msra.mxu0 0
    %187 = vmatprep.subr.bf16.mxu0 0
    %188 = vmatpush1.bf16.msra.mxu0 0
    %189 = vmatprep.subr.bf16.mxu0 0
    %190 = vmatpush1.bf16.msra.mxu0 0
    %191 = vmatprep.subr.bf16.mxu0 0
    %192 = vmatpush1.bf16.msra.mxu0 0
    %193 = vmatprep.subr.bf16.mxu0 0
    %194 = vmatpush1.bf16.msra.mxu0 0
    %195 = vmatprep.subr.bf16.mxu0 0
    %196 = vmatpush1.bf16.msra.mxu0 0
    %197 = vmatprep.subr.bf16.mxu0 0
    %198 = vmatpush1.bf16.msra.mxu0 0
    %199 = vmatprep.mubr.bf16.mxu0 0
    %200 = vmatmul.mubr.bf16.gmra.mrb[0].mxu0 %v95
    %v201 = vpop.f32.mrb[0].mxu0
    %v202 = vadd.f32 %v117, %v201
    %v203 = vpop.f32.mrb[0].mxu0
    %v204 = vpop.f32.mrb[0].mxu0
    %v205 = vadd.f32 %v117, %v204
    %v206 = vpop.f32.mrb[0].mxu0
    %207 = vdwg.mxu0
    %208 = vst.msk [vmem:[#allocation2] sm:$0xff] %vm48, %v202
    %209 = vst.msk [vmem:[#allocation2 + $0x8] sm:$0xff] %vm48, %v205
    // Predicated region
    $region22: #{feed_forward.1} parent=1 // pred_check
      _
    $region23: #{feed_forward.1} parent=1 // pred_check_branch
      %211 = sbr.rel (0) target = $region25
    $region24: #{feed_forward.1} parent=1 // pred_region
      %s213 = ssub.s32 256, 256
      %214 = vsyncadd [#allocation3], %s213
      %s215 = sshll.u32 [#allocation2], 4
      %s216 = int_to_ptr.vmem [resolvable:$true] %s215
      %221 = dma.vmem_to_hbm [thread:$0]  %s216, 256, %s5, [#allocation3], 128, 128, 8
    $region25: #{feed_forward.1} parent=1 // pred_fallthru
      _
    // Predicated region
    $region26: #{feed_forward.1} parent=1 // pred_check
      _
    $region27: #{feed_forward.1} parent=1 // pred_check_branch
      %223 = sbr.rel (0) target = $region29
    $region28: #{feed_forward.1} parent=1 // pred_region
      %224 = dma.done [#allocation3], 256
    $region29: #{feed_forward.1} parent=1 // pred_fallthru
      _
    %225 = vsyncpa [#allocation3], 1

</llo_original>
